<compile_context>
chip_gen: v7x
topology: tpu7x:2x2x1
jax: 0.10.0
libtpu: 0.0.40
codegen_flags: <defaults>
</compile_context>

<pallas_src>
import math

import jax
import jax.numpy as jnp
from jax.experimental import pallas as pl
from jax.experimental.pallas import tpu as pltpu


def _round_up(x, m):
    return ((x + m - 1) // m) * m


def _vmem_config():
    """Per-generation (vmem_limit_bytes, tile budget, min grid steps)."""
    cap = None
    try:
        info = pltpu.get_tpu_info()
        cap = int(getattr(info, "vmem_capacity_bytes", 0)) or None
    except Exception:
        cap = None
    if cap is None:
        cap = 64 << 20  # conservative default: assume v7x-like per-core VMEM
    if cap >= (100 << 20):
        # v5e / v6e: 128 MiB physical VMEM, single TensorCore per chip.
        return min(96 << 20, (cap * 3) // 4), min(80 << 20, (cap * 5) // 8), 1
    # v7x-like: 64 MiB per TensorCore, 2 TensorCores per chip. K/V blocks are
    # replicated per core, so keep the per-core tile budget conservative and
    # aim for >= 2 grid steps so both cores get work.
    return min(48 << 20, (cap * 3) // 4), min(26 << 20, (cap * 2) // 5), 2


def _choose_tq(seq_q, seq_k, d, in_itemsize, attn_itemsize, has_mask,
               return_attn, budget, min_steps):
    """Query-row tile that keeps the per-step VMEM under `budget`."""
    seq_q8 = max(8, _round_up(seq_q, 8))

    def vmem_bytes(tq):
        kv = 2 * seq_k * d * in_itemsize                       # K + V, 1 buffer each
        q_io = 4 * tq * d * in_itemsize                        # q + out tiles, 2 buffers
        attn_io = (2 * tq * seq_k * attn_itemsize) if return_attn else 0
        mask_io = (2 * tq * seq_k) if has_mask else 0          # int8 mask, 2 buffers
        f32_tmp = 3 * tq * seq_k * 4                           # scores / exp / attn
        return kv + q_io + attn_io + mask_io + f32_tmp

    pow2 = (1024, 512, 256, 128, 64, 32, 16, 8)
    cands = []
    # Exact row counts first: block second-to-last dim == full array dim is
    # legal, so these avoid any query-row padding and post-call slices.
    if seq_q <= 1024:
        cands.append(seq_q)
    if seq_q8 != seq_q and seq_q8 <= 1024:
        cands.append(seq_q8)
    # Large divisors of the (8-rounded) row count: keep seq_q_pad == seq_q8.
    cands += [t for t in pow2 if t >= 128 and t < seq_q8 and seq_q8 % t == 0
              and t not in cands]
    # Everything else, largest first.
    cands += [t for t in pow2 if t < seq_q8 and t not in cands]

    for tq in cands:
        if vmem_bytes(tq) > budget:
            continue
        steps = 1 if tq >= seq_q else -(-seq_q // tq)
        if steps < min_steps and tq > 8:
            continue  # v7x: keep both TensorCores busy when we can split rows
        return tq
    # TODO(synk): switch to a kv-tiled online-softmax kernel here instead of
    # returning the smallest tile and accepting possible VMEM pressure.
    return 8


def _attn_body(q_ref, k_ref, v_ref, mask_ref, out_ref, attn_ref, *, scale,
               use_bf16_matmul, approx_reciprocal):
    q = q_ref[...]
    k = k_ref[...]
    v = v_ref[...]
    if use_bf16_matmul and q.dtype == jnp.float32:
        # MXU runs bf16 at 4-8x the f32 rate; accumulation stays f32 below.
        q = q.astype(jnp.bfloat16)
        k = k.astype(jnp.bfloat16)
        v = v.astype(jnp.bfloat16)

    # Fold 1/sqrt(d_model) into the small (tq, d) q tile (cheapest place).
    q = q * jnp.asarray(scale, dtype=q.dtype)

    # scores[i, j] = sum_d q[i, d] * k[j, d] -- contract last-vs-last so the
    # MXU consumes k directly (no in-kernel transpose), f32 accumulation.
    scores = jax.lax.dot_general(
        q, k,
        dimension_numbers=(((1,), (1,)), ((), ())),
        preferred_element_type=jnp.float32,
    )
    if mask_ref is not None:
        scores = jnp.where(mask_ref[...] != 0, jnp.float32(-1e10), scores)

    # Exact row softmax over all keys (each q tile sees every key, so no
    # online rescaling is needed and rows are exact).
    m = jnp.max(scores, axis=1, keepdims=True)
    e = jnp.exp(scores - m)
    denom = jnp.sum(e, axis=1, keepdims=True)
    if approx_reciprocal:
        attn = e * pl.reciprocal(denom, approx=True)   # EUP slot, ~free
    else:
        attn = e / denom                               # rows sum to 1 exactly

    # Dropout(p=0.1) is the identity in eval mode.
    p = attn.astype(v.dtype)  # single cast reused by attn writeback + PV matmul
    if attn_ref is not None:
        attn_ref[...] = p if attn_ref.dtype == p.dtype else attn.astype(attn_ref.dtype)
    out_ref[...] = jnp.dot(
        p, v, preferred_element_type=jnp.float32
    ).astype(out_ref.dtype)


def _make_kernel(has_mask, return_attn, scale, use_bf16_matmul, approx_reciprocal):
    def kernel(*refs):
        q_ref, k_ref, v_ref = refs[0], refs[1], refs[2]
        idx = 3
        mask_ref = None
        if has_mask:
            mask_ref = refs[idx]
            idx += 1
        out_ref = refs[idx]
        idx += 1
        attn_ref = refs[idx] if return_attn else None
        _attn_body(q_ref, k_ref, v_ref, mask_ref, out_ref, attn_ref,
                   scale=scale, use_bf16_matmul=use_bf16_matmul,
                   approx_reciprocal=approx_reciprocal)
    return kernel


def attention(q, k, v, attn_mask=None, *, d_model=None, use_bf16_matmul=False,
              approx_reciprocal=False, return_attn=True, attn_dtype=None):
    """Forward pass of the PyTorch Attention module (inference semantics).

    q, k, v: (seq, d_model) arrays.
    attn_mask: optional (seq_q, seq_k) bool/int array (nonzero -> fill -1e10).
    Returns (output, attn) like the module (attn omitted if return_attn=False).
    """
    assert q.ndim == 2 and k.ndim == 2 and v.ndim == 2
    seq_q, d = q.shape
    seq_k, d_k = k.shape
    assert d == d_k and v.shape == (seq_k, d)
    if d_model is None:
        d_model = d
    scale = 1.0 / math.sqrt(d_model)

    out_dtype = q.dtype
    if attn_dtype is None:
        attn_dtype = q.dtype

    has_mask = attn_mask is not None
    vmem_limit, budget, min_steps = _vmem_config()
    in_isz = jnp.dtype(q.dtype).itemsize
    tq = _choose_tq(seq_q, seq_k, d, in_isz, jnp.dtype(attn_dtype).itemsize,
                    has_mask, return_attn, budget, min_steps)

    # Pad query rows only when the tile does not cover them exactly; padded
    # rows (zero q, unmasked) produce finite values and are sliced off below.
    seq_q_pad = seq_q if tq >= seq_q else _round_up(seq_q, tq)
    tq = min(tq, seq_q_pad)
    if seq_q_pad != seq_q:
        q = jnp.pad(q, ((0, seq_q_pad - seq_q), (0, 0)))

    args = [q, k, v]
    if has_mask:
        mask = attn_mask.astype(jnp.int8)   # 4x less HBM traffic than int32
        if seq_q_pad != seq_q:
            mask = jnp.pad(mask, ((0, seq_q_pad - seq_q), (0, 0)))
        args.append(mask)

    kernel = _make_kernel(has_mask, return_attn, scale, use_bf16_matmul,
                          approx_reciprocal)

    def build(single_buffer_kv):
        # Constant index_map => the K/V block never changes; a single buffer
        # halves their resident VMEM footprint.
        kv_kwargs = {"pipeline_mode": pl.Buffered(1)} if single_buffer_kv else {}
        in_specs = [
            pl.BlockSpec((tq, d), lambda i: (i, 0)),                    # q tile
            pl.BlockSpec((seq_k, d), lambda i: (0, 0), **kv_kwargs),    # K resident
            pl.BlockSpec((seq_k, d), lambda i: (0, 0), **kv_kwargs),    # V resident
        ]
        if has_mask:
            in_specs.append(pl.BlockSpec((tq, seq_k), lambda i: (i, 0)))
        out_spec_o = pl.BlockSpec((tq, d), lambda i: (i, 0))
        out_shape_o = jax.ShapeDtypeStruct((seq_q_pad, d), out_dtype)
        if return_attn:
            out_specs = (out_spec_o, pl.BlockSpec((tq, seq_k), lambda i: (i, 0)))
            out_shape = (out_shape_o,
                         jax.ShapeDtypeStruct((seq_q_pad, seq_k), attn_dtype))
        else:
            out_specs = out_spec_o
            out_shape = out_shape_o
        return pl.pallas_call(
            kernel,
            out_shape=out_shape,
            grid_spec=pltpu.PrefetchScalarGridSpec(
                num_scalar_prefetch=0,
                grid=(seq_q_pad // tq,),
                in_specs=in_specs,
                out_specs=out_specs,
            ),
            compiler_params=pltpu.CompilerParams(
                dimension_semantics=("parallel",),   # shard q tiles across TCs
                vmem_limit_bytes=vmem_limit,
            ),
        )

    try:
        result = build(True)(*args)
    except Exception:
        # Fallback for jax versions / lowering paths that reject
        # pipeline_mode=pl.Buffered(1): K/V revert to default double-buffering.
        result = build(False)(*args)

    if return_attn:
        out, attn = result
    else:
        out, attn = result, None

    if seq_q_pad != seq_q:
        out = out[:seq_q]
        if attn is not None:
            attn = attn[:seq_q]
    return (out, attn) if return_attn else out


def _reference(q, k, v, scale, attn_mask=None):
    scores = (q @ k.T) * scale
    if attn_mask is not None:
        scores = jnp.where(attn_mask, -1e10, scores)
    attn = jax.nn.softmax(scores, axis=1)
    return attn @ v, attn


if __name__ == "__main__":
    key = jax.random.PRNGKey(0)
    seq, d_model = 8, 32  # (sent_num, num_filters)
    kq, kk, kv = jax.random.split(key, 3)
    q = jax.random.normal(kq, (seq, d_model), dtype=jnp.float32)
    k = jax.random.normal(kk, (seq, d_model), dtype=jnp.float32)
    v = jax.random.normal(kv, (seq, d_model), dtype=jnp.float32)

    scale = 1.0 / math.sqrt(d_model)

    # 1) default path: f32 operands, exact softmax divide.
    out, attn = jax.block_until_ready(attention(q, k, v))
    ref_out, ref_attn = _reference(q, k, v, scale)
    assert jnp.allclose(out, ref_out, atol=2e-3, rtol=2e-3), "output mismatch"
    assert jnp.allclose(attn, ref_attn, atol=2e-3, rtol=2e-3), "attn mismatch"

    # 2) masked path (boolean upper-triangular mask, True -> masked out).
    mask = jnp.triu(jnp.ones((seq, seq), dtype=bool), k=1)
    out_m, attn_m = jax.block_until_ready(attention(q, k, v, attn_mask=mask))
    ref_out_m, ref_attn_m = _reference(q, k, v, scale, mask)
    assert jnp.allclose(out_m, ref_out_m, atol=2e-3, rtol=2e-3), "masked output mismatch"
    assert jnp.allclose(attn_m, ref_attn_m, atol=2e-3, rtol=2e-3), "masked attn mismatch"

    # 3) fast path: bf16 MXU operands + approx reciprocal (looser tolerance).
    out_f, attn_f = jax.block_until_ready(
        attention(q, k, v, use_bf16_matmul=True, approx_reciprocal=True))
    assert jnp.allclose(out_f, ref_out, atol=5e-2, rtol=5e-2), "bf16 output mismatch"
    assert jnp.allclose(attn_f, ref_attn, atol=5e-2, rtol=5e-2), "bf16 attn mismatch"

    print("KERNEL_OK")
</pallas_src>

<mosaic_0001>
module attributes {stable_mosaic.version = 11 : i64} {
  func.func @kernel(%arg0: i32, %arg1: memref<8x32xf32, #tpu.memory_space<vmem>>, %arg2: memref<8x32xf32, #tpu.memory_space<vmem>>, %arg3: memref<8x32xf32, #tpu.memory_space<vmem>>, %arg4: memref<8x32xf32, #tpu.memory_space<vmem>>, %arg5: memref<8x8xf32, #tpu.memory_space<vmem>>) attributes {dimension_semantics = [#tpu.dimension_semantics<parallel>], iteration_bounds = array<i64: 1>, scalar_prefetch = 0 : i64, scratch_operands = 0 : i64, tpu.core_type = #tpu.core_type<tc>, window_params = [{transform_indices = @transform_0, window_bounds = array<i64: 8, 32>}, {pipeline_mode = #tpu.pipeline_mode<synchronous>, transform_indices = @transform_1, window_bounds = array<i64: 8, 32>}, {pipeline_mode = #tpu.pipeline_mode<synchronous>, transform_indices = @transform_2, window_bounds = array<i64: 8, 32>}, {transform_indices = @transform_3, window_bounds = array<i64: 8, 32>}, {transform_indices = @transform_4, window_bounds = array<i64: 8, 8>}]} {
    %c0 = arith.constant 0 : index
    %c0_0 = arith.constant 0 : index
    %0 = vector.load %arg1[%c0, %c0_0] : memref<8x32xf32, #tpu.memory_space<vmem>>, vector<8x32xf32>
    %c0_1 = arith.constant 0 : index
    %c0_2 = arith.constant 0 : index
    %1 = vector.load %arg2[%c0_1, %c0_2] : memref<8x32xf32, #tpu.memory_space<vmem>>, vector<8x32xf32>
    %c0_3 = arith.constant 0 : index
    %c0_4 = arith.constant 0 : index
    %2 = vector.load %arg3[%c0_3, %c0_4] : memref<8x32xf32, #tpu.memory_space<vmem>>, vector<8x32xf32>
    %cst = arith.constant 0.176776692 : f32
    %3 = vector.broadcast %cst : f32 to vector<8x32xf32>
    %4 = arith.mulf %0, %3 : vector<8x32xf32>
    %cst_5 = arith.constant dense<0.000000e+00> : vector<8x8xf32>
    %5 = tpu.matmul %4, %1, %cst_5 {dimension_numbers = #tpu.dot_dimension_numbers<[1], [1], [0], [0], [0, 0, 1, 0], [], []>} : vector<8x32xf32>, vector<8x32xf32>, vector<8x8xf32> -> vector<8x8xf32>
    %cst_6 = arith.constant dense<0xFF800000> : vector<8xf32>
    %6 = vector.multi_reduction <maximumf>, %5, %cst_6 [1] : vector<8x8xf32> to vector<8xf32>
    %7 = vector.shape_cast %6 : vector<8xf32> to vector<8x1xf32>
    %8 = vector.broadcast %7 : vector<8x1xf32> to vector<8x8xf32>
    %9 = arith.subf %5, %8 : vector<8x8xf32>
    %10 = math.exp %9 : vector<8x8xf32>
    %cst_7 = arith.constant dense<0.000000e+00> : vector<8xf32>
    %11 = vector.multi_reduction <add>, %10, %cst_7 [1] : vector<8x8xf32> to vector<8xf32>
    %12 = vector.shape_cast %11 : vector<8xf32> to vector<8x1xf32>
    %13 = vector.broadcast %12 : vector<8x1xf32> to vector<8x8xf32>
    %14 = arith.divf %10, %13 : vector<8x8xf32>
    %c0_8 = arith.constant 0 : index
    %c0_9 = arith.constant 0 : index
    %15 = vector.load %arg5[%c0_8, %c0_9] : memref<8x8xf32, #tpu.memory_space<vmem>>, vector<8x8xf32>
    tpu.vector_store %arg5[%c0_8, %c0_9], %14 {strides = array<i32>} : memref<8x8xf32, #tpu.memory_space<vmem>>, vector<8x8xf32>,
    %cst_10 = arith.constant dense<0.000000e+00> : vector<8x32xf32>
    %16 = tpu.matmul %14, %2, %cst_10 {dimension_numbers = #tpu.dot_dimension_numbers<[1], [0], [0], [1], [0, 0, 1, 1], [], []>} : vector<8x8xf32>, vector<8x32xf32>, vector<8x32xf32> -> vector<8x32xf32>
    %c0_11 = arith.constant 0 : index
    %c0_12 = arith.constant 0 : index
    %17 = vector.load %arg4[%c0_11, %c0_12] : memref<8x32xf32, #tpu.memory_space<vmem>>, vector<8x32xf32>
    tpu.vector_store %arg4[%c0_11, %c0_12], %16 {strides = array<i32>} : memref<8x32xf32, #tpu.memory_space<vmem>>, vector<8x32xf32>,
    return
  }
  func.func @transform_0(%arg0: i32) -> (i32, i32) {
    %c0_i32 = arith.constant 0 : i32
    %c0_i32_0 = arith.constant 0 : i32
    return %arg0, %c0_i32 : i32, i32
  }
  func.func @transform_1(%arg0: i32) -> (i32, i32) {
    %c0_i32 = arith.constant 0 : i32
    %c0_i32_0 = arith.constant 0 : i32
    %c0_i32_1 = arith.constant 0 : i32
    return %c0_i32, %c0_i32_0 : i32, i32
  }
  func.func @transform_2(%arg0: i32) -> (i32, i32) {
    %c0_i32 = arith.constant 0 : i32
    %c0_i32_0 = arith.constant 0 : i32
    %c0_i32_1 = arith.constant 0 : i32
    return %c0_i32, %c0_i32_0 : i32, i32
  }
  func.func @transform_3(%arg0: i32) -> (i32, i32) {
    %c0_i32 = arith.constant 0 : i32
    %c0_i32_0 = arith.constant 0 : i32
    return %arg0, %c0_i32 : i32, i32
  }
  func.func @transform_4(%arg0: i32) -> (i32, i32) {
    %c0_i32 = arith.constant 0 : i32
    %c0_i32_0 = arith.constant 0 : i32
    return %arg0, %c0_i32 : i32, i32
  }
}

module attributes {stable_mosaic.version = 11 : i64} {
  func.func @kernel(%arg0: i32, %arg1: memref<8x32xf32, #tpu.memory_space<vmem>>, %arg2: memref<8x32xf32, #tpu.memory_space<vmem>>, %arg3: memref<8x32xf32, #tpu.memory_space<vmem>>, %arg4: memref<8x32xf32, #tpu.memory_space<vmem>>, %arg5: memref<8x8xf32, #tpu.memory_space<vmem>>) attributes {dimension_semantics = [#tpu.dimension_semantics<parallel>], iteration_bounds = array<i64: 1>, scalar_prefetch = 0 : i64, scratch_operands = 0 : i64, tpu.core_type = #tpu.core_type<tc>, window_params = [{transform_indices = @transform_0, window_bounds = array<i64: 8, 32>}, {pipeline_mode = #tpu.pipeline_mode<synchronous>, transform_indices = @transform_1, window_bounds = array<i64: 8, 32>}, {pipeline_mode = #tpu.pipeline_mode<synchronous>, transform_indices = @transform_2, window_bounds = array<i64: 8, 32>}, {transform_indices = @transform_3, window_bounds = array<i64: 8, 32>}, {transform_indices = @transform_4, window_bounds = array<i64: 8, 8>}]} {
    %c0 = arith.constant 0 : index
    %c0_0 = arith.constant 0 : index
    %0 = vector.load %arg1[%c0, %c0_0] : memref<8x32xf32, #tpu.memory_space<vmem>>, vector<8x32xf32>
    %c0_1 = arith.constant 0 : index
    %c0_2 = arith.constant 0 : index
    %1 = vector.load %arg2[%c0_1, %c0_2] : memref<8x32xf32, #tpu.memory_space<vmem>>, vector<8x32xf32>
    %c0_3 = arith.constant 0 : index
    %c0_4 = arith.constant 0 : index
    %2 = vector.load %arg3[%c0_3, %c0_4] : memref<8x32xf32, #tpu.memory_space<vmem>>, vector<8x32xf32>
    %cst = arith.constant 0.176776692 : f32
    %3 = vector.broadcast %cst : f32 to vector<8x32xf32>
    %4 = arith.mulf %0, %3 : vector<8x32xf32>
    %cst_5 = arith.constant dense<0.000000e+00> : vector<8x8xf32>
    %5 = tpu.matmul %4, %1, %cst_5 {dimension_numbers = #tpu.dot_dimension_numbers<[1], [1], [0], [0], [0, 0, 1, 0], [], []>} : vector<8x32xf32>, vector<8x32xf32>, vector<8x8xf32> -> vector<8x8xf32>
    %cst_6 = arith.constant dense<0xFF800000> : vector<8xf32>
    %6 = vector.multi_reduction <maximumf>, %5, %cst_6 [1] : vector<8x8xf32> to vector<8xf32>
    %7 = vector.shape_cast %6 : vector<8xf32> to vector<8x1xf32>
    %8 = vector.broadcast %7 : vector<8x1xf32> to vector<8x8xf32>
    %9 = arith.subf %5, %8 : vector<8x8xf32>
    %10 = math.exp %9 : vector<8x8xf32>
    %cst_7 = arith.constant dense<0.000000e+00> : vector<8xf32>
    %11 = vector.multi_reduction <add>, %10, %cst_7 [1] : vector<8x8xf32> to vector<8xf32>
    %12 = vector.shape_cast %11 : vector<8xf32> to vector<8x1xf32>
    %13 = vector.broadcast %12 : vector<8x1xf32> to vector<8x8xf32>
    %14 = arith.divf %10, %13 : vector<8x8xf32>
    %c0_8 = arith.constant 0 : index
    %c0_9 = arith.constant 0 : index
    %15 = vector.load %arg5[%c0_8, %c0_9] : memref<8x8xf32, #tpu.memory_space<vmem>>, vector<8x8xf32>
    tpu.vector_store %arg5[%c0_8, %c0_9], %14 {strides = array<i32>} : memref<8x8xf32, #tpu.memory_space<vmem>>, vector<8x8xf32>,
    %cst_10 = arith.constant dense<0.000000e+00> : vector<8x32xf32>
    %16 = tpu.matmul %14, %2, %cst_10 {dimension_numbers = #tpu.dot_dimension_numbers<[1], [0], [0], [1], [0, 0, 1, 1], [], []>} : vector<8x8xf32>, vector<8x32xf32>, vector<8x32xf32> -> vector<8x32xf32>
    %c0_11 = arith.constant 0 : index
    %c0_12 = arith.constant 0 : index
    %17 = vector.load %arg4[%c0_11, %c0_12] : memref<8x32xf32, #tpu.memory_space<vmem>>, vector<8x32xf32>
    tpu.vector_store %arg4[%c0_11, %c0_12], %16 {strides = array<i32>} : memref<8x32xf32, #tpu.memory_space<vmem>>, vector<8x32xf32>,
    return
  }
  func.func @transform_0(%arg0: i32) -> (i32, i32) {
    %c0_i32 = arith.constant 0 : i32
    %c0_i32_0 = arith.constant 0 : i32
    return %arg0, %c0_i32 : i32, i32
  }
  func.func @transform_1(%arg0: i32) -> (i32, i32) {
    %c0_i32 = arith.constant 0 : i32
    %c0_i32_0 = arith.constant 0 : i32
    %c0_i32_1 = arith.constant 0 : i32
    return %c0_i32, %c0_i32_0 : i32, i32
  }
  func.func @transform_2(%arg0: i32) -> (i32, i32) {
    %c0_i32 = arith.constant 0 : i32
    %c0_i32_0 = arith.constant 0 : i32
    %c0_i32_1 = arith.constant 0 : i32
    return %c0_i32, %c0_i32_0 : i32, i32
  }
  func.func @transform_3(%arg0: i32) -> (i32, i32) {
    %c0_i32 = arith.constant 0 : i32
    %c0_i32_0 = arith.constant 0 : i32
    return %arg0, %c0_i32 : i32, i32
  }
  func.func @transform_4(%arg0: i32) -> (i32, i32) {
    %c0_i32 = arith.constant 0 : i32
    %c0_i32_0 = arith.constant 0 : i32
    return %arg0, %c0_i32 : i32, i32
  }
}

</mosaic_0001>

<llo_original>
// kernel: tpu_custom_call.1
$region0: #{tpu_custom_call.1}
  #allocation0 [shape = 'u32[]', space=smem, size = 0x4, offset = 0x4, fixed_abs, tag = 'smem constant byte address 0x4 - core index']
  #allocation1 [shape = 'u32[144,128]{1,0:T(1,128)}', space=vmem, size = 0x12000, scoped, tag = 'internal scratch']
  %s0 = inlined_call_operand.hbm [shape: f32[8,32], index: 0, kind: input, shape index: {}]
  %s1 = inlined_call_operand.hbm [shape: f32[8,32], index: 1, kind: input, shape index: {}]
  %s2 = inlined_call_operand.hbm [shape: f32[8,32], index: 2, kind: input, shape index: {}]
  %s3 = inlined_call_operand.hbm [shape: f32[8,32], index: 3, kind: output, shape index: {0}]
  %s4 = inlined_call_operand.hbm [shape: f32[8,8], index: 4, kind: output, shape index: {1}]
  %5 = xla_tuple %s3, %s4
  %s6 = sld [smem:[#allocation0]]
  $region42: #{tpu_custom_call.1} parent=0
    _
  %s8 = ssub.s32 1, %s6
  %s9 = scalar_select 0, %s8, %s6
  $region1: #{tpu_custom_call.1} parent=0
    #allocation2 [shape = 'u8[4096]{0}', space=vmem, size = 0x1000, scoped, tag = 'input window, operand 0, single buffered']
    #allocation3 [shape = 's32[1]{0}', space=sflag, size = 0x4, scoped, tag = 'scoped memory for tpu_custom_call.1']
    #allocation4 [shape = 's32[1]{0}', space=sflag, size = 0x4, scoped, tag = 'scoped memory for tpu_custom_call.1']
    #allocation5 [shape = 'u8[4096]{0}', space=vmem, size = 0x1000, scoped, tag = 'input window, operand 1, single buffered']
    #allocation6 [shape = 's32[1]{0}', space=sflag, size = 0x4, scoped, tag = 'scoped memory for tpu_custom_call.1']
    #allocation7 [shape = 'u8[4096]{0}', space=vmem, size = 0x1000, scoped, tag = 'input window, operand 2, single buffered']
    #allocation8 [shape = 'u8[4096]{0}', space=vmem, size = 0x1000, scoped, tag = 'output window, operand 0, single buffered']
    #allocation9 [shape = 'u8[4096]{0}', space=vmem, size = 0x1000, scoped, tag = 'output window, operand 1, single buffered']
    #allocation10 [shape = 's32[1]{0}', space=sflag, size = 0x4, scoped, tag = 'scoped memory for tpu_custom_call.1']
    %10 = vsyncpa [#allocation3], 0
    %11 = vsyncpa [#allocation6], 0
    %12 = vsyncpa [#allocation4], 0
    %13 = vsyncpa [#allocation10], 0
    // Predicated region
    $region2: #{tpu_custom_call.1} parent=1 // pred_check
      _
    $region3: #{tpu_custom_call.1} parent=1 // pred_check_branch
      %15 = sbr.rel (0) target = $region5
    $region4: #{tpu_custom_call.1} parent=1 // pred_region
      %s17 = ssub.s32 128, 128
      %18 = vsyncadd [#allocation3], %s17
      %s20 = sshll.u32 [#allocation2], 4
      %s21 = int_to_ptr.vmem [resolvable:$true] %s20
      %23 = dma.hbm_to_vmem [thread:$0]  %s0, 128, %s21, [#allocation3]
    $region5: #{tpu_custom_call.1} parent=1 // pred_fallthru
      _
    // Predicated region
    $region6: #{tpu_custom_call.1} parent=1 // pred_check
      _
    $region7: #{tpu_custom_call.1} parent=1 // pred_check_branch
      %25 = sbr.rel (0) target = $region9
    $region8: #{tpu_custom_call.1} parent=1 // pred_region
      %s27 = ssub.s32 128, 128
      %28 = vsyncadd [#allocation6], %s27
      %s30 = sshll.u32 [#allocation5], 4
      %s31 = int_to_ptr.vmem [resolvable:$true] %s30
      %33 = dma.hbm_to_vmem [thread:$0]  %s1, 128, %s31, [#allocation6]
    $region9: #{tpu_custom_call.1} parent=1 // pred_fallthru
      _
    // Predicated region
    $region10: #{tpu_custom_call.1} parent=1 // pred_check
      _
    $region11: #{tpu_custom_call.1} parent=1 // pred_check_branch
      %35 = sbr.rel (0) target = $region13
    $region12: #{tpu_custom_call.1} parent=1 // pred_region
      %s37 = ssub.s32 128, 128
      %38 = vsyncadd [#allocation6], %s37
      %s40 = sshll.u32 [#allocation7], 4
      %s41 = int_to_ptr.vmem [resolvable:$true] %s40
      %43 = dma.hbm_to_vmem [thread:$0]  %s2, 128, %s41, [#allocation6]
    $region13: #{tpu_custom_call.1} parent=1 // pred_fallthru
      _
    // Predicated region
    $region14: #{tpu_custom_call.1} parent=1 // pred_check
      _
    $region15: #{tpu_custom_call.1} parent=1 // pred_check_branch
      %45 = sbr.rel (0) target = $region17
    $region16: #{tpu_custom_call.1} parent=1 // pred_region
      %46 = dma.done [#allocation3], 128
    $region17: #{tpu_custom_call.1} parent=1 // pred_fallthru
      _
    // Predicated region
    $region18: #{tpu_custom_call.1} parent=1 // pred_check
      _
    $region19: #{tpu_custom_call.1} parent=1 // pred_check_branch
      %48 = sbr.rel (0) target = $region21
    $region20: #{tpu_custom_call.1} parent=1 // pred_region
      %49 = dma.done [#allocation6], 128
    $region21: #{tpu_custom_call.1} parent=1 // pred_fallthru
      _
    // Predicated region
    $region22: #{tpu_custom_call.1} parent=1 // pred_check
      _
    $region23: #{tpu_custom_call.1} parent=1 // pred_check_branch
      %51 = sbr.rel (0) target = $region25
    $region24: #{tpu_custom_call.1} parent=1 // pred_region
      %52 = dma.done [#allocation6], 128
    $region25: #{tpu_custom_call.1} parent=1 // pred_fallthru
      _
    %v53 = vld [vmem:[#allocation2] sm:$0xff]
    %v54 = vld [vmem:[#allocation5] sm:$0xff]
    %v55 = vld [vmem:[#allocation7] sm:$0xff]
    %v56 = vmul.f32 %v53, 0.17677669
    %vm57 = vcmask 261120
    %v59 = vsel %vm57, %v56, 0
    %v62 = vsel %vm57, %v54, 0
    %64 = vmatprep.subr.mxu0 0.0
    %65 = vmatpush1.xpose.msra.mxu0 %v62
    %66 = vmatprep.subr.mxu0 0.0
    %67 = vmatpush1.xpose.msra.mxu0 0.0
    %68 = vmatprep.subr.mxu0 0.0
    %69 = vmatpush1.xpose.msra.mxu0 0.0
    %70 = vmatprep.subr.mxu0 0.0
    %71 = vmatpush1.xpose.msra.mxu0 0.0
    %72 = vmatprep.subr.mxu0 0.0
    %73 = vmatpush1.xpose.msra.mxu0 0.0
    %74 = vmatprep.subr.mxu0 0.0
    %75 = vmatpush1.xpose.msra.mxu0 0.0
    %76 = vmatprep.subr.mxu0 0.0
    %77 = vmatpush1.xpose.msra.mxu0 0.0
    %78 = vmatprep.subr.mxu0 0.0
    %79 = vmatpush1.xpose.msra.mxu0 0.0
    %80 = vmatprep.subr.mxu0 0.0
    %81 = vmatpush1.xpose.msra.mxu0 0.0
    %82 = vmatprep.subr.mxu0 0.0
    %83 = vmatpush1.xpose.msra.mxu0 0.0
    %84 = vmatprep.subr.mxu0 0.0
    %85 = vmatpush1.xpose.msra.mxu0 0.0
    %86 = vmatprep.subr.mxu0 0.0
    %87 = vmatpush1.xpose.msra.mxu0 0.0
    %88 = vmatprep.subr.mxu0 0.0
    %89 = vmatpush1.xpose.msra.mxu0 0.0
    %90 = vmatprep.subr.mxu0 0.0
    %91 = vmatpush1.xpose.msra.mxu0 0.0
    %92 = vmatprep.subr.mxu0 0.0
    %93 = vmatpush1.xpose.msra.mxu0 0.0
    %94 = vmatprep.subr.mxu0 0.0
    %95 = vmatpush1.xpose.msra.mxu0 0.0
    %96 = vmatprep.subr.mxu0 0.0
    %97 = vmatpush1.xpose.msra.mxu0 0.0
    %98 = vmatprep.subr.mxu0 0.0
    %99 = vmatpush1.xpose.msra.mxu0 0.0
    %100 = vmatprep.subr.mxu0 0.0
    %101 = vmatpush1.xpose.msra.mxu0 0.0
    %102 = vmatprep.subr.mxu0 0.0
    %103 = vmatpush1.xpose.msra.mxu0 0.0
    %104 = vmatprep.subr.mxu0 0.0
    %105 = vmatpush1.xpose.msra.mxu0 0.0
    %106 = vmatprep.subr.mxu0 0.0
    %107 = vmatpush1.xpose.msra.mxu0 0.0
    %108 = vmatprep.subr.mxu0 0.0
    %109 = vmatpush1.xpose.msra.mxu0 0.0
    %110 = vmatprep.subr.mxu0 0.0
    %111 = vmatpush1.xpose.msra.mxu0 0.0
    %112 = vmatprep.subr.mxu0 0.0
    %113 = vmatpush1.xpose.msra.mxu0 0.0
    %114 = vmatprep.subr.mxu0 0.0
    %115 = vmatpush1.xpose.msra.mxu0 0.0
    %116 = vmatprep.subr.mxu0 0.0
    %117 = vmatpush1.xpose.msra.mxu0 0.0
    %118 = vmatprep.subr.mxu0 0.0
    %119 = vmatpush1.xpose.msra.mxu0 0.0
    %120 = vmatprep.subr.mxu0 0.0
    %121 = vmatpush1.xpose.msra.mxu0 0.0
    %122 = vmatprep.subr.mxu0 0.0
    %123 = vmatpush1.xpose.msra.mxu0 0.0
    %124 = vmatprep.subr.mxu0 0.0
    %125 = vmatpush1.xpose.msra.mxu0 0.0
    %126 = vmatprep.subr.mxu0 0.0
    %127 = vmatpush1.xpose.msra.mxu0 0.0
    %128 = vmatprep.mubr.f32.mxu0 0.0
    %129 = vmatmul.mubr.f32.gmra.mrb[0].mxu0 %v59
    %v130 = vpop.f32.mrb[0].mxu0
    %v131 = vadd.f32 0.0, %v130
    %v132 = vpop.f32.mrb[0].mxu0
    %133 = vdwg.mxu0
    %vm134 = vcmask 64512
    %v135 = vsel %vm134, %v131, -inf
    %136 = vmax.xlane.f32.xlu0 %v135
    %v137 = vpop.xlane.xlu0 %136
    %v138 = vsub.f32 %v131, %v137
    %v139 = vmul.f32 %v138, 1.442695
    %v140 = vpow.pop %v139
    %v141 = vsel %vm134, %v140, 0.0
    %142 = vadd.xlane.f32.xlu0 %v141
    %v143 = vpop.xlane.xlu0 %142
    %v144 = vrcp.pop %v143
    %v145 = vmul.f32 %v140, %v144
    %146 = vst.msk [vmem:[#allocation9] sm:$0xff] %vm134, %v145
    %v148 = vsel %vm134, %v145, 0
    %150 = vmatprep.subr.mxu0 0.0
    %151 = vmatpush1.msra.mxu0 %v55
    %152 = vmatprep.subr.mxu0 0.0
    %153 = vmatpush1.msra.mxu0 0.0
    %154 = vmatprep.subr.mxu0 0.0
    %155 = vmatpush1.msra.mxu0 0.0
    %156 = vmatprep.subr.mxu0 0.0
    %157 = vmatpush1.msra.mxu0 0.0
    %158 = vmatprep.subr.mxu0 0.0
    %159 = vmatpush1.msra.mxu0 0.0
    %160 = vmatprep.subr.mxu0 0.0
    %161 = vmatpush1.msra.mxu0 0.0
    %162 = vmatprep.subr.mxu0 0.0
    %163 = vmatpush1.msra.mxu0 0.0
    %164 = vmatprep.subr.mxu0 0.0
    %165 = vmatpush1.msra.mxu0 0.0
    %166 = vmatprep.subr.mxu0 0.0
    %167 = vmatpush1.msra.mxu0 0.0
    %168 = vmatprep.subr.mxu0 0.0
    %169 = vmatpush1.msra.mxu0 0.0
    %170 = vmatprep.subr.mxu0 0.0
    %171 = vmatpush1.msra.mxu0 0.0
    %172 = vmatprep.subr.mxu0 0.0
    %173 = vmatpush1.msra.mxu0 0.0
    %174 = vmatprep.subr.mxu0 0.0
    %175 = vmatpush1.msra.mxu0 0.0
    %176 = vmatprep.subr.mxu0 0.0
    %177 = vmatpush1.msra.mxu0 0.0
    %178 = vmatprep.subr.mxu0 0.0
    %179 = vmatpush1.msra.mxu0 0.0
    %180 = vmatprep.subr.mxu0 0.0
    %181 = vmatpush1.msra.mxu0 0.0
    %182 = vmatprep.subr.mxu0 0.0
    %183 = vmatpush1.msra.mxu0 0.0
    %184 = vmatprep.subr.mxu0 0.0
    %185 = vmatpush1.msra.mxu0 0.0
    %186 = vmatprep.subr.mxu0 0.0
    %187 = vmatpush1.msra.mxu0 0.0
    %188 = vmatprep.subr.mxu0 0.0
    %189 = vmatpush1.msra.mxu0 0.0
    %190 = vmatprep.subr.mxu0 0.0
    %191 = vmatpush1.msra.mxu0 0.0
    %192 = vmatprep.subr.mxu0 0.0
    %193 = vmatpush1.msra.mxu0 0.0
    %194 = vmatprep.subr.mxu0 0.0
    %195 = vmatpush1.msra.mxu0 0.0
    %196 = vmatprep.subr.mxu0 0.0
    %197 = vmatpush1.msra.mxu0 0.0
    %198 = vmatprep.subr.mxu0 0.0
    %199 = vmatpush1.msra.mxu0 0.0
    %200 = vmatprep.subr.mxu0 0.0
    %201 = vmatpush1.msra.mxu0 0.0
    %202 = vmatprep.subr.mxu0 0.0
    %203 = vmatpush1.msra.mxu0 0.0
    %204 = vmatprep.subr.mxu0 0.0
    %205 = vmatpush1.msra.mxu0 0.0
    %206 = vmatprep.subr.mxu0 0.0
    %207 = vmatpush1.msra.mxu0 0.0
    %208 = vmatprep.subr.mxu0 0.0
    %209 = vmatpush1.msra.mxu0 0.0
    %210 = vmatprep.subr.mxu0 0.0
    %211 = vmatpush1.msra.mxu0 0.0
    %212 = vmatprep.subr.mxu0 0.0
    %213 = vmatpush1.msra.mxu0 0.0
    %214 = vmatprep.mubr.f32.mxu0 0.0
    %215 = vmatmul.mubr.f32.gmra.mrb[0].mxu0 %v148
    %v216 = vpop.f32.mrb[0].mxu0
    %v217 = vadd.f32 0.0, %v216
    %v218 = vpop.f32.mrb[0].mxu0
    %219 = vdwg.mxu0
    %220 = vst.msk [vmem:[#allocation8] sm:$0xff] %vm57, %v217
    // Predicated region
    $region26: #{tpu_custom_call.1} parent=1 // pred_check
      _
    $region27: #{tpu_custom_call.1} parent=1 // pred_check_branch
      %222 = sbr.rel (0) target = $region29
    $region28: #{tpu_custom_call.1} parent=1 // pred_region
      %s224 = ssub.s32 128, 128
      %225 = vsyncadd [#allocation4], %s224
      %s227 = sshll.u32 [#allocation8], 4
      %s228 = int_to_ptr.vmem [resolvable:$true] %s227
      %230 = dma.vmem_to_hbm [thread:$0]  %s228, 128, %s3, [#allocation4]
    $region29: #{tpu_custom_call.1} parent=1 // pred_fallthru
      _
    // Predicated region
    $region30: #{tpu_custom_call.1} parent=1 // pred_check
      _
    $region31: #{tpu_custom_call.1} parent=1 // pred_check_branch
      %232 = sbr.rel (0) target = $region33
    $region32: #{tpu_custom_call.1} parent=1 // pred_region
      %s234 = ssub.s32 128, 128
      %235 = vsyncadd [#allocation10], %s234
      %s237 = sshll.u32 [#allocation9], 4
      %s238 = int_to_ptr.vmem [resolvable:$true] %s237
      %240 = dma.vmem_to_hbm [thread:$0]  %s238, 128, %s4, [#allocation10]
    $region33: #{tpu_custom_call.1} parent=1 // pred_fallthru
      _
    // Predicated region
    $region34: #{tpu_custom_call.1} parent=1 // pred_check
      _
    $region35: #{tpu_custom_call.1} parent=1 // pred_check_branch
      %242 = sbr.rel (0) target = $region37
    $region36: #{tpu_custom_call.1} parent=1 // pred_region
      %243 = dma.done [#allocation4], 128
    $region37: #{tpu_custom_call.1} parent=1 // pred_fallthru
      _
    // Predicated region
    $region38: #{tpu_custom_call.1} parent=1 // pred_check
      _
    $region39: #{tpu_custom_call.1} parent=1 // pred_check_branch
      %245 = sbr.rel (0) target = $region41
    $region40: #{tpu_custom_call.1} parent=1 // pred_region
      %246 = dma.done [#allocation10], 128
    $region41: #{tpu_custom_call.1} parent=1 // pred_fallthru
      _
    %247 = vsyncpa [#allocation3], 1
    %248 = vsyncpa [#allocation6], 1
    %249 = vsyncpa [#allocation4], 1
    %250 = vsyncpa [#allocation10], 1

// kernel: tpu_custom_call.1
$region0: #{tpu_custom_call.1}
  #allocation0 [shape = 'u32[]', space=smem, size = 0x4, offset = 0x4, fixed_abs, tag = 'smem constant byte address 0x4 - core index']
  #allocation1 [shape = 'u32[144,128]{1,0:T(1,128)}', space=vmem, size = 0x12000, scoped, tag = 'internal scratch']
  %s0 = inlined_call_operand.hbm [shape: f32[8,32], index: 0, kind: input, shape index: {}]
  %s1 = inlined_call_operand.hbm [shape: f32[8,32], index: 1, kind: input, shape index: {}]
  %s2 = inlined_call_operand.hbm [shape: f32[8,32], index: 2, kind: input, shape index: {}]
  %s3 = inlined_call_operand.hbm [shape: f32[8,32], index: 3, kind: output, shape index: {0}]
  %s4 = inlined_call_operand.hbm [shape: f32[8,8], index: 4, kind: output, shape index: {1}]
  %5 = xla_tuple %s3, %s4
  %s6 = sld [smem:[#allocation0]]
  $region42: #{tpu_custom_call.1} parent=0
    _
  %s8 = ssub.s32 1, %s6
  %s9 = scalar_select 0, %s8, %s6
  $region1: #{tpu_custom_call.1} parent=0
    #allocation2 [shape = 'u8[4096]{0}', space=vmem, size = 0x1000, scoped, tag = 'input window, operand 0, single buffered']
    #allocation3 [shape = 's32[1]{0}', space=sflag, size = 0x4, scoped, tag = 'scoped memory for tpu_custom_call.1']
    #allocation4 [shape = 's32[1]{0}', space=sflag, size = 0x4, scoped, tag = 'scoped memory for tpu_custom_call.1']
    #allocation5 [shape = 'u8[4096]{0}', space=vmem, size = 0x1000, scoped, tag = 'input window, operand 1, single buffered']
    #allocation6 [shape = 's32[1]{0}', space=sflag, size = 0x4, scoped, tag = 'scoped memory for tpu_custom_call.1']
    #allocation7 [shape = 'u8[4096]{0}', space=vmem, size = 0x1000, scoped, tag = 'input window, operand 2, single buffered']
    #allocation8 [shape = 'u8[4096]{0}', space=vmem, size = 0x1000, scoped, tag = 'output window, operand 0, single buffered']
    #allocation9 [shape = 'u8[4096]{0}', space=vmem, size = 0x1000, scoped, tag = 'output window, operand 1, single buffered']
    #allocation10 [shape = 's32[1]{0}', space=sflag, size = 0x4, scoped, tag = 'scoped memory for tpu_custom_call.1']
    %10 = vsyncpa [#allocation3], 0
    %11 = vsyncpa [#allocation6], 0
    %12 = vsyncpa [#allocation4], 0
    %13 = vsyncpa [#allocation10], 0
    // Predicated region
    $region2: #{tpu_custom_call.1} parent=1 // pred_check
      _
    $region3: #{tpu_custom_call.1} parent=1 // pred_check_branch
      %15 = sbr.rel (0) target = $region5
    $region4: #{tpu_custom_call.1} parent=1 // pred_region
      %s17 = ssub.s32 128, 128
      %18 = vsyncadd [#allocation3], %s17
      %s20 = sshll.u32 [#allocation2], 4
      %s21 = int_to_ptr.vmem [resolvable:$true] %s20
      %23 = dma.hbm_to_vmem [thread:$0]  %s0, 128, %s21, [#allocation3]
    $region5: #{tpu_custom_call.1} parent=1 // pred_fallthru
      _
    // Predicated region
    $region6: #{tpu_custom_call.1} parent=1 // pred_check
      _
    $region7: #{tpu_custom_call.1} parent=1 // pred_check_branch
      %25 = sbr.rel (0) target = $region9
    $region8: #{tpu_custom_call.1} parent=1 // pred_region
      %s27 = ssub.s32 128, 128
      %28 = vsyncadd [#allocation6], %s27
      %s30 = sshll.u32 [#allocation5], 4
      %s31 = int_to_ptr.vmem [resolvable:$true] %s30
      %33 = dma.hbm_to_vmem [thread:$0]  %s1, 128, %s31, [#allocation6]
    $region9: #{tpu_custom_call.1} parent=1 // pred_fallthru
      _
    // Predicated region
    $region10: #{tpu_custom_call.1} parent=1 // pred_check
      _
    $region11: #{tpu_custom_call.1} parent=1 // pred_check_branch
      %35 = sbr.rel (0) target = $region13
    $region12: #{tpu_custom_call.1} parent=1 // pred_region
      %s37 = ssub.s32 128, 128
      %38 = vsyncadd [#allocation6], %s37
      %s40 = sshll.u32 [#allocation7], 4
      %s41 = int_to_ptr.vmem [resolvable:$true] %s40
      %43 = dma.hbm_to_vmem [thread:$0]  %s2, 128, %s41, [#allocation6]
    $region13: #{tpu_custom_call.1} parent=1 // pred_fallthru
      _
    // Predicated region
    $region14: #{tpu_custom_call.1} parent=1 // pred_check
      _
    $region15: #{tpu_custom_call.1} parent=1 // pred_check_branch
      %45 = sbr.rel (0) target = $region17
    $region16: #{tpu_custom_call.1} parent=1 // pred_region
      %46 = dma.done [#allocation3], 128
    $region17: #{tpu_custom_call.1} parent=1 // pred_fallthru
      _
    // Predicated region
    $region18: #{tpu_custom_call.1} parent=1 // pred_check
      _
    $region19: #{tpu_custom_call.1} parent=1 // pred_check_branch
      %48 = sbr.rel (0) target = $region21
    $region20: #{tpu_custom_call.1} parent=1 // pred_region
      %49 = dma.done [#allocation6], 128
    $region21: #{tpu_custom_call.1} parent=1 // pred_fallthru
      _
    // Predicated region
    $region22: #{tpu_custom_call.1} parent=1 // pred_check
      _
    $region23: #{tpu_custom_call.1} parent=1 // pred_check_branch
      %51 = sbr.rel (0) target = $region25
    $region24: #{tpu_custom_call.1} parent=1 // pred_region
      %52 = dma.done [#allocation6], 128
    $region25: #{tpu_custom_call.1} parent=1 // pred_fallthru
      _
    %v53 = vld [vmem:[#allocation2] sm:$0xff]
    %v54 = vld [vmem:[#allocation5] sm:$0xff]
    %v55 = vld [vmem:[#allocation7] sm:$0xff]
    %v56 = vmul.f32 %v53, 0.17677669
    %vm57 = vcmask 261120
    %v59 = vsel %vm57, %v56, 0
    %v62 = vsel %vm57, %v54, 0
    %64 = vmatprep.subr.mxu0 0.0
    %65 = vmatpush1.xpose.msra.mxu0 %v62
    %66 = vmatprep.subr.mxu0 0.0
    %67 = vmatpush1.xpose.msra.mxu0 0.0
    %68 = vmatprep.subr.mxu0 0.0
    %69 = vmatpush1.xpose.msra.mxu0 0.0
    %70 = vmatprep.subr.mxu0 0.0
    %71 = vmatpush1.xpose.msra.mxu0 0.0
    %72 = vmatprep.subr.mxu0 0.0
    %73 = vmatpush1.xpose.msra.mxu0 0.0
    %74 = vmatprep.subr.mxu0 0.0
    %75 = vmatpush1.xpose.msra.mxu0 0.0
    %76 = vmatprep.subr.mxu0 0.0
    %77 = vmatpush1.xpose.msra.mxu0 0.0
    %78 = vmatprep.subr.mxu0 0.0
    %79 = vmatpush1.xpose.msra.mxu0 0.0
    %80 = vmatprep.subr.mxu0 0.0
    %81 = vmatpush1.xpose.msra.mxu0 0.0
    %82 = vmatprep.subr.mxu0 0.0
    %83 = vmatpush1.xpose.msra.mxu0 0.0
    %84 = vmatprep.subr.mxu0 0.0
    %85 = vmatpush1.xpose.msra.mxu0 0.0
    %86 = vmatprep.subr.mxu0 0.0
    %87 = vmatpush1.xpose.msra.mxu0 0.0
    %88 = vmatprep.subr.mxu0 0.0
    %89 = vmatpush1.xpose.msra.mxu0 0.0
    %90 = vmatprep.subr.mxu0 0.0
    %91 = vmatpush1.xpose.msra.mxu0 0.0
    %92 = vmatprep.subr.mxu0 0.0
    %93 = vmatpush1.xpose.msra.mxu0 0.0
    %94 = vmatprep.subr.mxu0 0.0
    %95 = vmatpush1.xpose.msra.mxu0 0.0
    %96 = vmatprep.subr.mxu0 0.0
    %97 = vmatpush1.xpose.msra.mxu0 0.0
    %98 = vmatprep.subr.mxu0 0.0
    %99 = vmatpush1.xpose.msra.mxu0 0.0
    %100 = vmatprep.subr.mxu0 0.0
    %101 = vmatpush1.xpose.msra.mxu0 0.0
    %102 = vmatprep.subr.mxu0 0.0
    %103 = vmatpush1.xpose.msra.mxu0 0.0
    %104 = vmatprep.subr.mxu0 0.0
    %105 = vmatpush1.xpose.msra.mxu0 0.0
    %106 = vmatprep.subr.mxu0 0.0
    %107 = vmatpush1.xpose.msra.mxu0 0.0
    %108 = vmatprep.subr.mxu0 0.0
    %109 = vmatpush1.xpose.msra.mxu0 0.0
    %110 = vmatprep.subr.mxu0 0.0
    %111 = vmatpush1.xpose.msra.mxu0 0.0
    %112 = vmatprep.subr.mxu0 0.0
    %113 = vmatpush1.xpose.msra.mxu0 0.0
    %114 = vmatprep.subr.mxu0 0.0
    %115 = vmatpush1.xpose.msra.mxu0 0.0
    %116 = vmatprep.subr.mxu0 0.0
    %117 = vmatpush1.xpose.msra.mxu0 0.0
    %118 = vmatprep.subr.mxu0 0.0
    %119 = vmatpush1.xpose.msra.mxu0 0.0
    %120 = vmatprep.subr.mxu0 0.0
    %121 = vmatpush1.xpose.msra.mxu0 0.0
    %122 = vmatprep.subr.mxu0 0.0
    %123 = vmatpush1.xpose.msra.mxu0 0.0
    %124 = vmatprep.subr.mxu0 0.0
    %125 = vmatpush1.xpose.msra.mxu0 0.0
    %126 = vmatprep.subr.mxu0 0.0
    %127 = vmatpush1.xpose.msra.mxu0 0.0
    %128 = vmatprep.mubr.f32.mxu0 0.0
    %129 = vmatmul.mubr.f32.gmra.mrb[0].mxu0 %v59
    %v130 = vpop.f32.mrb[0].mxu0
    %v131 = vadd.f32 0.0, %v130
    %v132 = vpop.f32.mrb[0].mxu0
    %133 = vdwg.mxu0
    %vm134 = vcmask 64512
    %v135 = vsel %vm134, %v131, -inf
    %136 = vmax.xlane.f32.xlu0 %v135
    %v137 = vpop.xlane.xlu0 %136
    %v138 = vsub.f32 %v131, %v137
    %v139 = vmul.f32 %v138, 1.442695
    %v140 = vpow.pop %v139
    %v141 = vsel %vm134, %v140, 0.0
    %142 = vadd.xlane.f32.xlu0 %v141
    %v143 = vpop.xlane.xlu0 %142
    %v144 = vrcp.pop %v143
    %v145 = vmul.f32 %v140, %v144
    %146 = vst.msk [vmem:[#allocation9] sm:$0xff] %vm134, %v145
    %v148 = vsel %vm134, %v145, 0
    %150 = vmatprep.subr.mxu0 0.0
    %151 = vmatpush1.msra.mxu0 %v55
    %152 = vmatprep.subr.mxu0 0.0
    %153 = vmatpush1.msra.mxu0 0.0
    %154 = vmatprep.subr.mxu0 0.0
    %155 = vmatpush1.msra.mxu0 0.0
    %156 = vmatprep.subr.mxu0 0.0
    %157 = vmatpush1.msra.mxu0 0.0
    %158 = vmatprep.subr.mxu0 0.0
    %159 = vmatpush1.msra.mxu0 0.0
    %160 = vmatprep.subr.mxu0 0.0
    %161 = vmatpush1.msra.mxu0 0.0
    %162 = vmatprep.subr.mxu0 0.0
    %163 = vmatpush1.msra.mxu0 0.0
    %164 = vmatprep.subr.mxu0 0.0
    %165 = vmatpush1.msra.mxu0 0.0
    %166 = vmatprep.subr.mxu0 0.0
    %167 = vmatpush1.msra.mxu0 0.0
    %168 = vmatprep.subr.mxu0 0.0
    %169 = vmatpush1.msra.mxu0 0.0
    %170 = vmatprep.subr.mxu0 0.0
    %171 = vmatpush1.msra.mxu0 0.0
    %172 = vmatprep.subr.mxu0 0.0
    %173 = vmatpush1.msra.mxu0 0.0
    %174 = vmatprep.subr.mxu0 0.0
    %175 = vmatpush1.msra.mxu0 0.0
    %176 = vmatprep.subr.mxu0 0.0
    %177 = vmatpush1.msra.mxu0 0.0
    %178 = vmatprep.subr.mxu0 0.0
    %179 = vmatpush1.msra.mxu0 0.0
    %180 = vmatprep.subr.mxu0 0.0
    %181 = vmatpush1.msra.mxu0 0.0
    %182 = vmatprep.subr.mxu0 0.0
    %183 = vmatpush1.msra.mxu0 0.0
    %184 = vmatprep.subr.mxu0 0.0
    %185 = vmatpush1.msra.mxu0 0.0
    %186 = vmatprep.subr.mxu0 0.0
    %187 = vmatpush1.msra.mxu0 0.0
    %188 = vmatprep.subr.mxu0 0.0
    %189 = vmatpush1.msra.mxu0 0.0
    %190 = vmatprep.subr.mxu0 0.0
    %191 = vmatpush1.msra.mxu0 0.0
    %192 = vmatprep.subr.mxu0 0.0
    %193 = vmatpush1.msra.mxu0 0.0
    %194 = vmatprep.subr.mxu0 0.0
    %195 = vmatpush1.msra.mxu0 0.0
    %196 = vmatprep.subr.mxu0 0.0
    %197 = vmatpush1.msra.mxu0 0.0
    %198 = vmatprep.subr.mxu0 0.0
    %199 = vmatpush1.msra.mxu0 0.0
    %200 = vmatprep.subr.mxu0 0.0
    %201 = vmatpush1.msra.mxu0 0.0
    %202 = vmatprep.subr.mxu0 0.0
    %203 = vmatpush1.msra.mxu0 0.0
    %204 = vmatprep.subr.mxu0 0.0
    %205 = vmatpush1.msra.mxu0 0.0
    %206 = vmatprep.subr.mxu0 0.0
    %207 = vmatpush1.msra.mxu0 0.0
    %208 = vmatprep.subr.mxu0 0.0
    %209 = vmatpush1.msra.mxu0 0.0
    %210 = vmatprep.subr.mxu0 0.0
    %211 = vmatpush1.msra.mxu0 0.0
    %212 = vmatprep.subr.mxu0 0.0
    %213 = vmatpush1.msra.mxu0 0.0
    %214 = vmatprep.mubr.f32.mxu0 0.0
    %215 = vmatmul.mubr.f32.gmra.mrb[0].mxu0 %v148
    %v216 = vpop.f32.mrb[0].mxu0
    %v217 = vadd.f32 0.0, %v216
    %v218 = vpop.f32.mrb[0].mxu0
    %219 = vdwg.mxu0
    %220 = vst.msk [vmem:[#allocation8] sm:$0xff] %vm57, %v217
    // Predicated region
    $region26: #{tpu_custom_call.1} parent=1 // pred_check
      _
    $region27: #{tpu_custom_call.1} parent=1 // pred_check_branch
      %222 = sbr.rel (0) target = $region29
    $region28: #{tpu_custom_call.1} parent=1 // pred_region
      %s224 = ssub.s32 128, 128
      %225 = vsyncadd [#allocation4], %s224
      %s227 = sshll.u32 [#allocation8], 4
      %s228 = int_to_ptr.vmem [resolvable:$true] %s227
      %230 = dma.vmem_to_hbm [thread:$0]  %s228, 128, %s3, [#allocation4]
    $region29: #{tpu_custom_call.1} parent=1 // pred_fallthru
      _
    // Predicated region
    $region30: #{tpu_custom_call.1} parent=1 // pred_check
      _
    $region31: #{tpu_custom_call.1} parent=1 // pred_check_branch
      %232 = sbr.rel (0) target = $region33
    $region32: #{tpu_custom_call.1} parent=1 // pred_region
      %s234 = ssub.s32 128, 128
      %235 = vsyncadd [#allocation10], %s234
      %s237 = sshll.u32 [#allocation9], 4
      %s238 = int_to_ptr.vmem [resolvable:$true] %s237
      %240 = dma.vmem_to_hbm [thread:$0]  %s238, 128, %s4, [#allocation10]
    $region33: #{tpu_custom_call.1} parent=1 // pred_fallthru
      _
    // Predicated region
    $region34: #{tpu_custom_call.1} parent=1 // pred_check
      _
    $region35: #{tpu_custom_call.1} parent=1 // pred_check_branch
      %242 = sbr.rel (0) target = $region37
    $region36: #{tpu_custom_call.1} parent=1 // pred_region
      %243 = dma.done [#allocation4], 128
    $region37: #{tpu_custom_call.1} parent=1 // pred_fallthru
      _
    // Predicated region
    $region38: #{tpu_custom_call.1} parent=1 // pred_check
      _
    $region39: #{tpu_custom_call.1} parent=1 // pred_check_branch
      %245 = sbr.rel (0) target = $region41
    $region40: #{tpu_custom_call.1} parent=1 // pred_region
      %246 = dma.done [#allocation10], 128
    $region41: #{tpu_custom_call.1} parent=1 // pred_fallthru
      _
    %247 = vsyncpa [#allocation3], 1
    %248 = vsyncpa [#allocation6], 1
    %249 = vsyncpa [#allocation4], 1
    %250 = vsyncpa [#allocation10], 1

</llo_original>
